<compile_context>
chip_gen: v7x
topology: tpu7x:2x2x1
jax: 0.10.0
libtpu: 0.0.40
codegen_flags: <defaults>
</compile_context>

<pallas_src>
import jax
import jax.numpy as jnp
from jax.experimental import pallas as pl
from jax.experimental.pallas import tpu as pltpu

_EPS = 1e-8


def _conv_norm_act_kernel(x_ref, w_ref, b_ref, g_ref, bt_ref, a_ref,
                          o_ref, acc_ref):
    # x_ref  : (B_blk, Cin, T)   unpadded input block
    # w_ref  : (Cout, K*Cin)     conv weight, tap-major columns (bf16)
    # b_ref  : (Cout, 1) f32     conv bias
    # g_ref  : (Cout, 1) f32     GroupNorm gamma
    # bt_ref : (Cout, 1) f32     GroupNorm beta
    # a_ref  : (1, 1)    f32     PReLU slope (single shared parameter)
    # o_ref  : (B_blk, Cout, T)
    # acc_ref: (Cout, T) f32     conv accumulator scratch (reused per sample)
    b_blk, cin, t = x_ref.shape
    cout = o_ref.shape[1]
    k_size = w_ref.shape[1] // cin
    pad = (k_size - 1) // 2
    inv_n = 1.0 / (cout * t)

    # Lane-index iota, shared by all taps / samples (hoisted out of the loops).
    col = jax.lax.broadcasted_iota(jnp.int32, (cin, t), 1)

    for b in range(b_blk):                               # small static unroll
        x = x_ref[b]                                     # (Cin, T)

        # Build the (K*Cin, T) im2col slab: tap k holds x[:, t + k - pad]
        # (zero outside [0, T)).  pltpu.roll is an XLU rotation (cheap, off
        # the VALU slot); the wrapped boundary columns are zeroed with a
        # lane mask.
        taps = []
        for k in range(k_size):
            s = pad - k                                  # jnp.roll-style shift
            if s == 0:
                taps.append(x)
                continue
            xs = pltpu.roll(x, shift=s % t, axis=1)
            if s > 0:                                    # first s cols wrapped
                xs = jnp.where(col >= s, xs, 0.0)
            else:                                        # last -s cols wrapped
                xs = jnp.where(col < t + s, xs, 0.0)
            taps.append(xs)
        slab = jnp.concatenate(taps, axis=0).astype(w_ref.dtype)   # (K*Cin, T)

        # Whole conv for this sample = one MXU matmul with f32 accumulation.
        acc_ref[...] = jnp.dot(w_ref[...], slab,
                               preferred_element_type=jnp.float32) + b_ref[...]
        y = acc_ref[...]                                 # (Cout, T) f32

        # GroupNorm(1 group) == global LN over (Cout, T).  One traversal for
        # both moments, then fold mean/rsqrt/gamma/beta into per-channel
        # scale & shift so normalization is a single y*scale+shift pass.
        s1 = jnp.sum(y, axis=(0, 1), keepdims=True)                  # (1, 1)
        s2 = jnp.sum(y * y, axis=(0, 1), keepdims=True)              # (1, 1)
        mean = s1 * inv_n
        var = jnp.maximum(s2 * inv_n - mean * mean, 0.0)             # clamp
        scale = g_ref[...] * jax.lax.rsqrt(var + _EPS)               # (Cout, 1)
        shift = bt_ref[...] - mean * scale                           # (Cout, 1)
        z = y * scale + shift

        # PReLU with a single shared slope.
        o_ref[b] = jnp.where(z >= 0.0, z, a_ref[...] * z).astype(o_ref.dtype)


def _pick_batch_block(batch, per_sample_vmem_bytes, budget_bytes=8 << 20):
    """Pick how many samples to process per grid step.

    Prefer >1 sample per step (amortizes per-step pipeline overhead / enlarges
    DMAs) but keep the grid even when it is cheap to do so (v7x has 2 TCs).
    """
    best = 1
    for bb in (2, 4, 8):
        if batch % bb == 0 and bb * per_sample_vmem_bytes <= budget_bytes:
            best = bb
    if best >= 4 and (batch // best) % 2 == 1 and (batch // (best // 2)) % 2 == 0:
        best //= 2
    return best


def conv_norm_act(x, weight, bias, gamma, beta, prelu_a, *, stride=1, groups=1,
                  compute_dtype=jnp.bfloat16):
    """x: (B, Cin, T); weight: (Cout, Cin, K); bias/gamma/beta: (Cout,); prelu_a: scalar."""
    if stride != 1 or groups != 1:
        # TODO(synk): strided / grouped Conv1d variants not implemented in the kernel.
        raise NotImplementedError("only stride=1, groups=1 is supported")
    B, cin, T = x.shape
    cout, cin_w, K = weight.shape
    assert cin_w == cin, "weight Cin mismatch"
    if K % 2 == 0:
        # TODO(synk): even kSize (asymmetric 'same' padding, T_out = T-1) not supported.
        raise NotImplementedError("only odd kernel sizes are supported")
    T_out = T                                    # odd K, stride 1, same padding

    out_dtype = x.dtype
    # Weight reshaped tap-major to (Cout, K*Cin) so the conv is one matmul;
    # kept in bf16 for the MXU (accumulation is f32 inside the kernel).
    w2d = jnp.transpose(weight, (0, 2, 1)).reshape(cout, K * cin).astype(compute_dtype)
    b2 = bias.reshape(cout, 1).astype(jnp.float32)
    g2 = gamma.reshape(cout, 1).astype(jnp.float32)
    bt2 = beta.reshape(cout, 1).astype(jnp.float32)
    a2 = jnp.asarray(prelu_a, jnp.float32).reshape(1, 1)

    x_bytes = x.dtype.itemsize
    o_bytes = jnp.dtype(out_dtype).itemsize
    c_bytes = jnp.dtype(compute_dtype).itemsize

    per_sample = 2 * (cin * T * x_bytes + cout * T_out * o_bytes)   # dbl-buffered
    batch_block = _pick_batch_block(B, per_sample)
    grid = (B // batch_block,)

    # VMEM budget: double-buffered in/out blocks + resident weights/vectors +
    # f32 accumulator scratch + in-kernel im2col temporaries.
    block_in = batch_block * cin * T * x_bytes
    block_out = batch_block * cout * T_out * o_bytes
    w_bytes = cout * K * cin * c_bytes
    vec_bytes = (3 * cout + 1) * 4
    scratch_bytes = cout * T_out * 4
    slab_bytes = 2 * K * cin * T * 4
    needed = 2 * (block_in + block_out + w_bytes + vec_bytes) + scratch_bytes + slab_bytes
    if needed > (56 << 20):
        # TODO(synk): T-tiled two-pass GroupNorm (stats pass + normalize pass)
        # for per-sample blocks that do not fit v7x's 64 MiB VMEM.
        raise NotImplementedError("per-step block too large for VMEM")
    vmem_limit = int(min(max(2 * needed, 32 << 20), 64 << 20))

    cost = pl.CostEstimate(
        flops=2 * B * cout * K * cin * T_out + 8 * B * cout * T_out,
        transcendentals=B,                                   # one rsqrt per sample
        bytes_accessed=(B * cin * T * x_bytes
                        + cout * K * cin * c_bytes
                        + B * cout * T_out * o_bytes),
    )

    # NOTE: T is a multiple of 128 in the demo -> lane-dense, unmasked output
    # stores. For other T, stores become masked (correct but slower on v5e).
    return pl.pallas_call(
        _conv_norm_act_kernel,
        out_shape=jax.ShapeDtypeStruct((B, cout, T_out), out_dtype),
        grid_spec=pltpu.PrefetchScalarGridSpec(
            num_scalar_prefetch=0,
            grid=grid,
            in_specs=[
                pl.BlockSpec((batch_block, cin, T), lambda i: (i, 0, 0)),   # input block
                pl.BlockSpec((cout, K * cin), lambda i: (0, 0)),            # weights resident
                pl.BlockSpec((cout, 1), lambda i: (0, 0)),                  # bias
                pl.BlockSpec((cout, 1), lambda i: (0, 0)),                  # gamma
                pl.BlockSpec((cout, 1), lambda i: (0, 0)),                  # beta
                pl.BlockSpec((1, 1), lambda i: (0, 0)),                     # prelu slope
            ],
            out_specs=pl.BlockSpec((batch_block, cout, T_out), lambda i: (i, 0, 0)),
            scratch_shapes=[pltpu.VMEM((cout, T_out), jnp.float32)],
        ),
        compiler_params=pltpu.CompilerParams(
            dimension_semantics=("parallel",),
            vmem_limit_bytes=vmem_limit,
        ),
        cost_estimate=cost,
    )(x, w2d, b2, g2, bt2, a2)


def _ref_forward(x, weight, bias, gamma, beta, a, eps=_EPS):
    """Pure-JAX f32 reference matching the PyTorch forward."""
    K = weight.shape[-1]
    pad = (K - 1) // 2
    y = jax.lax.conv_general_dilated(
        x, weight, window_strides=(1,), padding=[(pad, pad)],
        dimension_numbers=("NCH", "OIH", "NCH"))
    y = y + bias[None, :, None]
    mean = jnp.mean(y, axis=(1, 2), keepdims=True)
    var = jnp.mean((y - mean) ** 2, axis=(1, 2), keepdims=True)
    y = (y - mean) / jnp.sqrt(var + eps)
    y = y * gamma[None, :, None] + beta[None, :, None]
    return jnp.where(y >= 0, y, a * y)


if __name__ == "__main__":
    # (B, Cin, T) 1-D feature maps; T = 128 keeps output stores lane-dense.
    B, cin, cout, K, T = 4, 16, 32, 5, 128

    key = jax.random.PRNGKey(0)
    kx, kw, kb, kg, kbt = jax.random.split(key, 5)
    x = jax.random.normal(kx, (B, cin, T), dtype=jnp.float32)
    weight = 0.1 * jax.random.normal(kw, (cout, cin, K), dtype=jnp.float32)
    bias = 0.1 * jax.random.normal(kb, (cout,), dtype=jnp.float32)
    gamma = 1.0 + 0.1 * jax.random.normal(kg, (cout,), dtype=jnp.float32)
    beta = 0.1 * jax.random.normal(kbt, (cout,), dtype=jnp.float32)
    prelu_a = jnp.float32(0.25)   # nn.PReLU() default init

    out = conv_norm_act(x, weight, bias, gamma, beta, prelu_a)
    out = jax.block_until_ready(out)

    ref = _ref_forward(x, weight, bias, gamma, beta, prelu_a)
    assert out.shape == ref.shape
    err = float(jnp.max(jnp.abs(out - ref)))
    # bf16 matmul operands (f32 accumulation) vs pure-f32 reference.
    assert err < 5e-2, f"mismatch vs reference (max err {err})"

    print("KERNEL_OK")
</pallas_src>

<mosaic_0001>
module attributes {stable_mosaic.version = 11 : i64} {
  func.func @_conv_norm_act_kernel(%arg0: i32, %arg1: memref<2x16x128xf32, #tpu.memory_space<vmem>>, %arg2: memref<32x80xbf16, #tpu.memory_space<vmem>>, %arg3: memref<32x1xf32, #tpu.memory_space<vmem>>, %arg4: memref<32x1xf32, #tpu.memory_space<vmem>>, %arg5: memref<32x1xf32, #tpu.memory_space<vmem>>, %arg6: memref<1x1xf32, #tpu.memory_space<vmem>>, %arg7: memref<2x32x128xf32, #tpu.memory_space<vmem>>, %arg8: memref<32x128xf32, #tpu.memory_space<vmem>>) attributes {dimension_semantics = [#tpu.dimension_semantics<parallel>], iteration_bounds = array<i64: 2>, scalar_prefetch = 0 : i64, scratch_operands = 1 : i64, tpu.core_type = #tpu.core_type<tc>, window_params = [{transform_indices = @transform_0, window_bounds = array<i64: 2, 16, 128>}, {pipeline_mode = #tpu.pipeline_mode<synchronous>, transform_indices = @transform_1, window_bounds = array<i64: 32, 80>}, {pipeline_mode = #tpu.pipeline_mode<synchronous>, transform_indices = @transform_2, window_bounds = array<i64: 32, 1>}, {pipeline_mode = #tpu.pipeline_mode<synchronous>, transform_indices = @transform_3, window_bounds = array<i64: 32, 1>}, {pipeline_mode = #tpu.pipeline_mode<synchronous>, transform_indices = @transform_4, window_bounds = array<i64: 32, 1>}, {pipeline_mode = #tpu.pipeline_mode<synchronous>, transform_indices = @transform_5, window_bounds = array<i64: 1, 1>}, {transform_indices = @transform_6, window_bounds = array<i64: 2, 32, 128>}]} {
    %0 = tpu.iota {dimensions = array<i32: 1>} : vector<16x128xi32>
    %c0 = arith.constant 0 : index
    %c0_0 = arith.constant 0 : index
    %c0_1 = arith.constant 0 : index
    %1 = vector.load %arg1[%c0, %c0_0, %c0_1] : memref<2x16x128xf32, #tpu.memory_space<vmem>>, vector<1x16x128xf32>
    %2 = vector.shape_cast %1 : vector<1x16x128xf32> to vector<16x128xf32>
    %c2_i32 = arith.constant 2 : i32
    %3 = tpu.dynamic_rotate %2 by %c2_i32 dim 1 : vector<16x128xf32>, i32 -> vector<16x128xf32>
    %c2_i32_2 = arith.constant 2 : i32
    %4 = vector.broadcast %c2_i32_2 : i32 to vector<16x128xi32>
    %5 = arith.cmpi sge, %0, %4 : vector<16x128xi32>
    %cst = arith.constant 0.000000e+00 : f32
    %6 = vector.broadcast %cst : f32 to vector<16x128xf32>
    %7 = arith.select %5, %3, %6 : vector<16x128xi1>, vector<16x128xf32>
    %c1_i32 = arith.constant 1 : i32
    %8 = tpu.dynamic_rotate %2 by %c1_i32 dim 1 : vector<16x128xf32>, i32 -> vector<16x128xf32>
    %c1_i32_3 = arith.constant 1 : i32
    %9 = vector.broadcast %c1_i32_3 : i32 to vector<16x128xi32>
    %10 = arith.cmpi sge, %0, %9 : vector<16x128xi32>
    %cst_4 = arith.constant 0.000000e+00 : f32
    %11 = vector.broadcast %cst_4 : f32 to vector<16x128xf32>
    %12 = arith.select %10, %8, %11 : vector<16x128xi1>, vector<16x128xf32>
    %c127_i32 = arith.constant 127 : i32
    %13 = tpu.dynamic_rotate %2 by %c127_i32 dim 1 : vector<16x128xf32>, i32 -> vector<16x128xf32>
    %c127_i32_5 = arith.constant 127 : i32
    %14 = vector.broadcast %c127_i32_5 : i32 to vector<16x128xi32>
    %15 = arith.cmpi slt, %0, %14 : vector<16x128xi32>
    %cst_6 = arith.constant 0.000000e+00 : f32
    %16 = vector.broadcast %cst_6 : f32 to vector<16x128xf32>
    %17 = arith.select %15, %13, %16 : vector<16x128xi1>, vector<16x128xf32>
    %c126_i32 = arith.constant 126 : i32
    %18 = tpu.dynamic_rotate %2 by %c126_i32 dim 1 : vector<16x128xf32>, i32 -> vector<16x128xf32>
    %c126_i32_7 = arith.constant 126 : i32
    %19 = vector.broadcast %c126_i32_7 : i32 to vector<16x128xi32>
    %20 = arith.cmpi slt, %0, %19 : vector<16x128xi32>
    %cst_8 = arith.constant 0.000000e+00 : f32
    %21 = vector.broadcast %cst_8 : f32 to vector<16x128xf32>
    %22 = arith.select %20, %18, %21 : vector<16x128xi1>, vector<16x128xf32>
    %23 = tpu.concatenate %7, %12, %2, %17, %22 in 0 : vector<16x128xf32>, vector<16x128xf32>, vector<16x128xf32>, vector<16x128xf32>, vector<16x128xf32> -> vector<80x128xf32>
    %24 = arith.truncf %23 : vector<80x128xf32> to vector<80x128xbf16>
    %c0_9 = arith.constant 0 : index
    %c0_10 = arith.constant 0 : index
    %25 = vector.load %arg2[%c0_9, %c0_10] : memref<32x80xbf16, #tpu.memory_space<vmem>>, vector<32x80xbf16>
    %cst_11 = arith.constant dense<0.000000e+00> : vector<32x128xf32>
    %26 = tpu.matmul %25, %24, %cst_11 {dimension_numbers = #tpu.dot_dimension_numbers<[1], [0], [0], [1], [0, 0, 1, 1], [], []>} : vector<32x80xbf16>, vector<80x128xbf16>, vector<32x128xf32> -> vector<32x128xf32>
    %c0_12 = arith.constant 0 : index
    %c0_13 = arith.constant 0 : index
    %27 = vector.load %arg3[%c0_12, %c0_13] : memref<32x1xf32, #tpu.memory_space<vmem>>, vector<32x1xf32>
    %28 = vector.broadcast %27 : vector<32x1xf32> to vector<32x128xf32>
    %29 = arith.addf %26, %28 : vector<32x128xf32>
    %c0_14 = arith.constant 0 : index
    %c0_15 = arith.constant 0 : index
    %30 = vector.load %arg8[%c0_14, %c0_15] : memref<32x128xf32, #tpu.memory_space<vmem>>, vector<32x128xf32>
    tpu.vector_store %arg8[%c0_14, %c0_15], %29 {strides = array<i32>} : memref<32x128xf32, #tpu.memory_space<vmem>>, vector<32x128xf32>,
    %c0_16 = arith.constant 0 : index
    %c0_17 = arith.constant 0 : index
    %31 = vector.load %arg8[%c0_16, %c0_17] : memref<32x128xf32, #tpu.memory_space<vmem>>, vector<32x128xf32>
    %32 = vector.shape_cast %31 : vector<32x128xf32> to vector<1x32x128xf32>
    %cst_18 = arith.constant dense<0.000000e+00> : vector<1xf32>
    %33 = vector.multi_reduction <add>, %32, %cst_18 [1, 2] : vector<1x32x128xf32> to vector<1xf32>
    %34 = vector.shape_cast %33 : vector<1xf32> to vector<1x1x1xf32>
    %35 = vector.extract %34[0, 0, 0] : f32 from vector<1x1x1xf32>
    %36 = vector.broadcast %35 : f32 to vector<1x1xf32>
    %37 = arith.mulf %31, %31 : vector<32x128xf32>
    %38 = vector.shape_cast %37 : vector<32x128xf32> to vector<1x32x128xf32>
    %cst_19 = arith.constant dense<0.000000e+00> : vector<1xf32>
    %39 = vector.multi_reduction <add>, %38, %cst_19 [1, 2] : vector<1x32x128xf32> to vector<1xf32>
    %40 = vector.shape_cast %39 : vector<1xf32> to vector<1x1x1xf32>
    %41 = vector.extract %40[0, 0, 0] : f32 from vector<1x1x1xf32>
    %42 = vector.broadcast %41 : f32 to vector<1x1xf32>
    %cst_20 = arith.constant 2.44140625E-4 : f32
    %43 = vector.broadcast %cst_20 : f32 to vector<1x1xf32>
    %44 = arith.mulf %36, %43 : vector<1x1xf32>
    %cst_21 = arith.constant 2.44140625E-4 : f32
    %45 = vector.broadcast %cst_21 : f32 to vector<1x1xf32>
    %46 = arith.mulf %42, %45 : vector<1x1xf32>
    %47 = arith.mulf %44, %44 : vector<1x1xf32>
    %48 = arith.subf %46, %47 : vector<1x1xf32>
    %cst_22 = arith.constant 0.000000e+00 : f32
    %49 = vector.broadcast %cst_22 : f32 to vector<1x1xf32>
    %50 = arith.maximumf %48, %49 : vector<1x1xf32>
    %c0_23 = arith.constant 0 : index
    %c0_24 = arith.constant 0 : index
    %51 = vector.load %arg4[%c0_23, %c0_24] : memref<32x1xf32, #tpu.memory_space<vmem>>, vector<32x1xf32>
    %cst_25 = arith.constant 9.99999993E-9 : f32
    %52 = vector.broadcast %cst_25 : f32 to vector<1x1xf32>
    %53 = arith.addf %50, %52 : vector<1x1xf32>
    %54 = math.rsqrt %53 : vector<1x1xf32>
    %55 = vector.broadcast %54 : vector<1x1xf32> to vector<32x1xf32>
    %56 = arith.mulf %51, %55 : vector<32x1xf32>
    %c0_26 = arith.constant 0 : index
    %c0_27 = arith.constant 0 : index
    %57 = vector.load %arg5[%c0_26, %c0_27] : memref<32x1xf32, #tpu.memory_space<vmem>>, vector<32x1xf32>
    %58 = vector.broadcast %44 : vector<1x1xf32> to vector<32x1xf32>
    %59 = arith.mulf %58, %56 : vector<32x1xf32>
    %60 = arith.subf %57, %59 : vector<32x1xf32>
    %61 = vector.broadcast %56 : vector<32x1xf32> to vector<32x128xf32>
    %62 = arith.mulf %31, %61 : vector<32x128xf32>
    %63 = vector.broadcast %60 : vector<32x1xf32> to vector<32x128xf32>
    %64 = arith.addf %62, %63 : vector<32x128xf32>
    %cst_28 = arith.constant 0.000000e+00 : f32
    %65 = vector.broadcast %cst_28 : f32 to vector<32x128xf32>
    %66 = arith.cmpf oge, %64, %65 : vector<32x128xf32>
    %c0_29 = arith.constant 0 : index
    %c0_30 = arith.constant 0 : index
    %67 = vector.load %arg6[%c0_29, %c0_30] : memref<1x1xf32, #tpu.memory_space<vmem>>, vector<1x1xf32>
    %68 = vector.broadcast %67 : vector<1x1xf32> to vector<32x128xf32>
    %69 = arith.mulf %68, %64 : vector<32x128xf32>
    %70 = arith.select %66, %64, %69 : vector<32x128xi1>, vector<32x128xf32>
    %c0_31 = arith.constant 0 : index
    %c0_32 = arith.constant 0 : index
    %c0_33 = arith.constant 0 : index
    %71 = vector.load %arg7[%c0_31, %c0_32, %c0_33] : memref<2x32x128xf32, #tpu.memory_space<vmem>>, vector<1x32x128xf32>
    %72 = vector.shape_cast %71 : vector<1x32x128xf32> to vector<32x128xf32>
    %73 = vector.shape_cast %70 : vector<32x128xf32> to vector<1x32x128xf32>
    tpu.vector_store %arg7[%c0_31, %c0_32, %c0_33], %73 {strides = array<i32>} : memref<2x32x128xf32, #tpu.memory_space<vmem>>, vector<1x32x128xf32>,
    %c1 = arith.constant 1 : index
    %c0_34 = arith.constant 0 : index
    %c0_35 = arith.constant 0 : index
    %74 = vector.load %arg1[%c1, %c0_34, %c0_35] : memref<2x16x128xf32, #tpu.memory_space<vmem>>, vector<1x16x128xf32>
    %75 = vector.shape_cast %74 : vector<1x16x128xf32> to vector<16x128xf32>
    %c2_i32_36 = arith.constant 2 : i32
    %76 = tpu.dynamic_rotate %75 by %c2_i32_36 dim 1 : vector<16x128xf32>, i32 -> vector<16x128xf32>
    %c2_i32_37 = arith.constant 2 : i32
    %77 = vector.broadcast %c2_i32_37 : i32 to vector<16x128xi32>
    %78 = arith.cmpi sge, %0, %77 : vector<16x128xi32>
    %cst_38 = arith.constant 0.000000e+00 : f32
    %79 = vector.broadcast %cst_38 : f32 to vector<16x128xf32>
    %80 = arith.select %78, %76, %79 : vector<16x128xi1>, vector<16x128xf32>
    %c1_i32_39 = arith.constant 1 : i32
    %81 = tpu.dynamic_rotate %75 by %c1_i32_39 dim 1 : vector<16x128xf32>, i32 -> vector<16x128xf32>
    %c1_i32_40 = arith.constant 1 : i32
    %82 = vector.broadcast %c1_i32_40 : i32 to vector<16x128xi32>
    %83 = arith.cmpi sge, %0, %82 : vector<16x128xi32>
    %cst_41 = arith.constant 0.000000e+00 : f32
    %84 = vector.broadcast %cst_41 : f32 to vector<16x128xf32>
    %85 = arith.select %83, %81, %84 : vector<16x128xi1>, vector<16x128xf32>
    %c127_i32_42 = arith.constant 127 : i32
    %86 = tpu.dynamic_rotate %75 by %c127_i32_42 dim 1 : vector<16x128xf32>, i32 -> vector<16x128xf32>
    %c127_i32_43 = arith.constant 127 : i32
    %87 = vector.broadcast %c127_i32_43 : i32 to vector<16x128xi32>
    %88 = arith.cmpi slt, %0, %87 : vector<16x128xi32>
    %cst_44 = arith.constant 0.000000e+00 : f32
    %89 = vector.broadcast %cst_44 : f32 to vector<16x128xf32>
    %90 = arith.select %88, %86, %89 : vector<16x128xi1>, vector<16x128xf32>
    %c126_i32_45 = arith.constant 126 : i32
    %91 = tpu.dynamic_rotate %75 by %c126_i32_45 dim 1 : vector<16x128xf32>, i32 -> vector<16x128xf32>
    %c126_i32_46 = arith.constant 126 : i32
    %92 = vector.broadcast %c126_i32_46 : i32 to vector<16x128xi32>
    %93 = arith.cmpi slt, %0, %92 : vector<16x128xi32>
    %cst_47 = arith.constant 0.000000e+00 : f32
    %94 = vector.broadcast %cst_47 : f32 to vector<16x128xf32>
    %95 = arith.select %93, %91, %94 : vector<16x128xi1>, vector<16x128xf32>
    %96 = tpu.concatenate %80, %85, %75, %90, %95 in 0 : vector<16x128xf32>, vector<16x128xf32>, vector<16x128xf32>, vector<16x128xf32>, vector<16x128xf32> -> vector<80x128xf32>
    %97 = arith.truncf %96 : vector<80x128xf32> to vector<80x128xbf16>
    %c0_48 = arith.constant 0 : index
    %c0_49 = arith.constant 0 : index
    %98 = vector.load %arg2[%c0_48, %c0_49] : memref<32x80xbf16, #tpu.memory_space<vmem>>, vector<32x80xbf16>
    %cst_50 = arith.constant dense<0.000000e+00> : vector<32x128xf32>
    %99 = tpu.matmul %98, %97, %cst_50 {dimension_numbers = #tpu.dot_dimension_numbers<[1], [0], [0], [1], [0, 0, 1, 1], [], []>} : vector<32x80xbf16>, vector<80x128xbf16>, vector<32x128xf32> -> vector<32x128xf32>
    %c0_51 = arith.constant 0 : index
    %c0_52 = arith.constant 0 : index
    %100 = vector.load %arg3[%c0_51, %c0_52] : memref<32x1xf32, #tpu.memory_space<vmem>>, vector<32x1xf32>
    %101 = vector.broadcast %100 : vector<32x1xf32> to vector<32x128xf32>
    %102 = arith.addf %99, %101 : vector<32x128xf32>
    %c0_53 = arith.constant 0 : index
    %c0_54 = arith.constant 0 : index
    %103 = vector.load %arg8[%c0_53, %c0_54] : memref<32x128xf32, #tpu.memory_space<vmem>>, vector<32x128xf32>
    tpu.vector_store %arg8[%c0_53, %c0_54], %102 {strides = array<i32>} : memref<32x128xf32, #tpu.memory_space<vmem>>, vector<32x128xf32>,
    %c0_55 = arith.constant 0 : index
    %c0_56 = arith.constant 0 : index
    %104 = vector.load %arg8[%c0_55, %c0_56] : memref<32x128xf32, #tpu.memory_space<vmem>>, vector<32x128xf32>
    %105 = vector.shape_cast %104 : vector<32x128xf32> to vector<1x32x128xf32>
    %cst_57 = arith.constant dense<0.000000e+00> : vector<1xf32>
    %106 = vector.multi_reduction <add>, %105, %cst_57 [1, 2] : vector<1x32x128xf32> to vector<1xf32>
    %107 = vector.shape_cast %106 : vector<1xf32> to vector<1x1x1xf32>
    %108 = vector.extract %107[0, 0, 0] : f32 from vector<1x1x1xf32>
    %109 = vector.broadcast %108 : f32 to vector<1x1xf32>
    %110 = arith.mulf %104, %104 : vector<32x128xf32>
    %111 = vector.shape_cast %110 : vector<32x128xf32> to vector<1x32x128xf32>
    %cst_58 = arith.constant dense<0.000000e+00> : vector<1xf32>
    %112 = vector.multi_reduction <add>, %111, %cst_58 [1, 2] : vector<1x32x128xf32> to vector<1xf32>
    %113 = vector.shape_cast %112 : vector<1xf32> to vector<1x1x1xf32>
    %114 = vector.extract %113[0, 0, 0] : f32 from vector<1x1x1xf32>
    %115 = vector.broadcast %114 : f32 to vector<1x1xf32>
    %cst_59 = arith.constant 2.44140625E-4 : f32
    %116 = vector.broadcast %cst_59 : f32 to vector<1x1xf32>
    %117 = arith.mulf %109, %116 : vector<1x1xf32>
    %cst_60 = arith.constant 2.44140625E-4 : f32
    %118 = vector.broadcast %cst_60 : f32 to vector<1x1xf32>
    %119 = arith.mulf %115, %118 : vector<1x1xf32>
    %120 = arith.mulf %117, %117 : vector<1x1xf32>
    %121 = arith.subf %119, %120 : vector<1x1xf32>
    %cst_61 = arith.constant 0.000000e+00 : f32
    %122 = vector.broadcast %cst_61 : f32 to vector<1x1xf32>
    %123 = arith.maximumf %121, %122 : vector<1x1xf32>
    %c0_62 = arith.constant 0 : index
    %c0_63 = arith.constant 0 : index
    %124 = vector.load %arg4[%c0_62, %c0_63] : memref<32x1xf32, #tpu.memory_space<vmem>>, vector<32x1xf32>
    %cst_64 = arith.constant 9.99999993E-9 : f32
    %125 = vector.broadcast %cst_64 : f32 to vector<1x1xf32>
    %126 = arith.addf %123, %125 : vector<1x1xf32>
    %127 = math.rsqrt %126 : vector<1x1xf32>
    %128 = vector.broadcast %127 : vector<1x1xf32> to vector<32x1xf32>
    %129 = arith.mulf %124, %128 : vector<32x1xf32>
    %c0_65 = arith.constant 0 : index
    %c0_66 = arith.constant 0 : index
    %130 = vector.load %arg5[%c0_65, %c0_66] : memref<32x1xf32, #tpu.memory_space<vmem>>, vector<32x1xf32>
    %131 = vector.broadcast %117 : vector<1x1xf32> to vector<32x1xf32>
    %132 = arith.mulf %131, %129 : vector<32x1xf32>
    %133 = arith.subf %130, %132 : vector<32x1xf32>
    %134 = vector.broadcast %129 : vector<32x1xf32> to vector<32x128xf32>
    %135 = arith.mulf %104, %134 : vector<32x128xf32>
    %136 = vector.broadcast %133 : vector<32x1xf32> to vector<32x128xf32>
    %137 = arith.addf %135, %136 : vector<32x128xf32>
    %cst_67 = arith.constant 0.000000e+00 : f32
    %138 = vector.broadcast %cst_67 : f32 to vector<32x128xf32>
    %139 = arith.cmpf oge, %137, %138 : vector<32x128xf32>
    %c0_68 = arith.constant 0 : index
    %c0_69 = arith.constant 0 : index
    %140 = vector.load %arg6[%c0_68, %c0_69] : memref<1x1xf32, #tpu.memory_space<vmem>>, vector<1x1xf32>
    %141 = vector.broadcast %140 : vector<1x1xf32> to vector<32x128xf32>
    %142 = arith.mulf %141, %137 : vector<32x128xf32>
    %143 = arith.select %139, %137, %142 : vector<32x128xi1>, vector<32x128xf32>
    %c1_70 = arith.constant 1 : index
    %c0_71 = arith.constant 0 : index
    %c0_72 = arith.constant 0 : index
    %144 = vector.load %arg7[%c1_70, %c0_71, %c0_72] : memref<2x32x128xf32, #tpu.memory_space<vmem>>, vector<1x32x128xf32>
    %145 = vector.shape_cast %144 : vector<1x32x128xf32> to vector<32x128xf32>
    %146 = vector.shape_cast %143 : vector<32x128xf32> to vector<1x32x128xf32>
    tpu.vector_store %arg7[%c1_70, %c0_71, %c0_72], %146 {strides = array<i32>} : memref<2x32x128xf32, #tpu.memory_space<vmem>>, vector<1x32x128xf32>,
    return
  }
  func.func @transform_0(%arg0: i32) -> (i32, i32, i32) {
    %c0_i32 = arith.constant 0 : i32
    %c0_i32_0 = arith.constant 0 : i32
    %c0_i32_1 = arith.constant 0 : i32
    return %arg0, %c0_i32, %c0_i32_0 : i32, i32, i32
  }
  func.func @transform_1(%arg0: i32) -> (i32, i32) {
    %c0_i32 = arith.constant 0 : i32
    %c0_i32_0 = arith.constant 0 : i32
    %c0_i32_1 = arith.constant 0 : i32
    return %c0_i32, %c0_i32_0 : i32, i32
  }
  func.func @transform_2(%arg0: i32) -> (i32, i32) {
    %c0_i32 = arith.constant 0 : i32
    %c0_i32_0 = arith.constant 0 : i32
    %c0_i32_1 = arith.constant 0 : i32
    return %c0_i32, %c0_i32_0 : i32, i32
  }
  func.func @transform_3(%arg0: i32) -> (i32, i32) {
    %c0_i32 = arith.constant 0 : i32
    %c0_i32_0 = arith.constant 0 : i32
    %c0_i32_1 = arith.constant 0 : i32
    return %c0_i32, %c0_i32_0 : i32, i32
  }
  func.func @transform_4(%arg0: i32) -> (i32, i32) {
    %c0_i32 = arith.constant 0 : i32
    %c0_i32_0 = arith.constant 0 : i32
    %c0_i32_1 = arith.constant 0 : i32
    return %c0_i32, %c0_i32_0 : i32, i32
  }
  func.func @transform_5(%arg0: i32) -> (i32, i32) {
    %c0_i32 = arith.constant 0 : i32
    %c0_i32_0 = arith.constant 0 : i32
    %c0_i32_1 = arith.constant 0 : i32
    return %c0_i32, %c0_i32_0 : i32, i32
  }
  func.func @transform_6(%arg0: i32) -> (i32, i32, i32) {
    %c0_i32 = arith.constant 0 : i32
    %c0_i32_0 = arith.constant 0 : i32
    %c0_i32_1 = arith.constant 0 : i32
    return %arg0, %c0_i32, %c0_i32_0 : i32, i32, i32
  }
}

</mosaic_0001>

<llo_original>
// kernel: tpu_custom_call.1
$region0: #{tpu_custom_call.1}
  #allocation0 [shape = 'u32[]', space=smem, size = 0x4, offset = 0x4, fixed_abs, tag = 'smem constant byte address 0x4 - core index']
  #allocation1 [shape = 'u32[144,128]{1,0:T(1,128)}', space=vmem, size = 0x12000, scoped, tag = 'internal scratch']
  #allocation2 [shape = 'f32[32,128]{1,0:T(8,128)}', space=vmem, size = 0x4000, scoped, tag = 'scratch operand']
  #allocation3 [shape = 'f32[1,1]{1,0:T(1,128)S(1)}', space=vmem, size = 0x200, scoped, tag = 'scoped memory for tpu_custom_call.1']
  %s0 = inlined_call_operand.vmem [shape: f32[4,16,128], index: 0, kind: input, shape index: {}]
  %s1 = inlined_call_operand.vmem [shape: bf16[32,80], index: 1, kind: input, shape index: {}]
  %s2 = inlined_call_operand.vmem [shape: f32[32,1], index: 2, kind: input, shape index: {}]
  %s3 = inlined_call_operand.vmem [shape: f32[32,1], index: 3, kind: input, shape index: {}]
  %s4 = inlined_call_operand.vmem [shape: f32[32,1], index: 4, kind: input, shape index: {}]
  %s5 = inlined_call_operand.<no memory space> [shape: f32[1,1], index: 5, kind: input, shape index: {}]
  %s6 = inlined_call_operand.hbm [shape: f32[4,32,128], index: 6, kind: output, shape index: {}]
  %s7 = sld [smem:[#allocation0]]
  $region57: #{tpu_custom_call.1} parent=0
    _
  %s9 = ssub.s32 1, %s7
  %s10 = scalar_select 0, %s9, %s7
  %v11 = vstv %s5
  %12 = vst [vmem:[#allocation3] sm:$0x1] %v11
  $region1: #{tpu_custom_call.1} parent=0
    #allocation4 [shape = 'u8[65536]{0}', space=vmem, size = 0x10000, scoped, tag = 'output window, operand 0']
    #allocation5 [shape = 's32[2]{0}', space=sflag, size = 0x8, scoped, tag = 'scoped memory for tpu_custom_call.1']
    %13 = vsyncpa [#allocation5], 0
    %s14 = scalar_lea.sflag [#allocation5], 1
    %15 = vsyncpa %s14, 0
    loop: start=0, step=1, limit=4
    $region2: #{tpu_custom_call.1} parent=1 // loop_pre_header
      _
    $region3: #{tpu_custom_call.1} parent=1 // loop_header
      %s17 = sphi 0, %s21
      %p18 = scmp.ge.s32.totalorder %s17, 4
      %s27 = sphi 0, %s29
      %s30 = sphi 0, %s27
      %s31 = sphi 0, %s30
      %s47 = sphi 0, %s31
      %s51 = sphi 0, %s51
      %s53 = sphi 0, %s51
      %s54 = sphi 0, %s53
      %s68 = sphi 0, %s54
      %s72 = sphi 0, %s72
      %s74 = sphi 0, %s72
      %s75 = sphi 0, %s74
      %s89 = sphi 0, %s75
      %s93 = sphi 0, %s93
      %s95 = sphi 0, %s93
      %s96 = sphi 0, %s95
      %s110 = sphi 0, %s96
      %s114 = sphi 0, %s114
      %s116 = sphi 0, %s114
      %s117 = sphi 0, %s116
      %s131 = sphi 0, %s117
      %s135 = sphi 0, %s135
      %s137 = sphi 0, %s135
      %s138 = sphi 0, %s137
      %s152 = sphi 0, %s138
      %s158 = sphi 0, %s160
      %s161 = sphi 0, %s158
      %s162 = sphi 0, %s161
      %s178 = sphi 0, %s162
    $region4: #{tpu_custom_call.1} parent=1 // loop_header_branch
      %20 = sbr.rel (%p18) target = $region8
    $region5: #{tpu_custom_call.1} parent=1 // loop_body
      %s22 = ssub.s32 %s17, 1
      %s23 = ssub.s32 %s17, 2
      %s24 = sadd.s32 %s17, 1
      %s25 = ssub.s32 %s17, %s24
      %p26 = scmp.eq.s32.totalorder %s25, 0
      %s28 = sadd.s32 %s27, 1
      %s29 = scalar_select %p26, %s27, %s28
      %p32 = pneg %p26
      %p33 = scmp.eq.s32.totalorder %s17, 1
      %p34 = por %p32, %p33
      %p35 = scmp.ne.s32.totalorder %s27, %s30
      %p36 = scmp.eq.s32.totalorder %s17, 0
      %p37 = por %p35, %p36
      %p38 = scmp.ne.s32.totalorder %s27, %s30
      %p39 = scmp.eq.s32.totalorder %s22, 1
      %p40 = por %p38, %p39
      %p41 = scmp.ne.s32.totalorder %s30, %s31
      %p42 = scmp.eq.s32.totalorder %s22, 0
      %p43 = por %p41, %p42
      %p44 = scmp.ne.s32.totalorder %s30, %s31
      %p45 = scmp.eq.s32.totalorder %s23, 1
      %p46 = por %p44, %p45
      %p48 = scmp.ne.s32.totalorder %s31, %s47
      %p49 = scmp.eq.s32.totalorder %s23, 0
      %p50 = por %p48, %p49
      %s52 = sadd.s32 %s51, 1
      %p55 = scmp.eq.s32.totalorder %s17, 1
      %p56 = scmp.ne.s32.totalorder %s51, %s53
      %p57 = scmp.eq.s32.totalorder %s17, 0
      %p58 = por %p56, %p57
      %p59 = scmp.ne.s32.totalorder %s51, %s53
      %p60 = scmp.eq.s32.totalorder %s22, 1
      %p61 = por %p59, %p60
      %p62 = scmp.ne.s32.totalorder %s53, %s54
      %p63 = scmp.eq.s32.totalorder %s22, 0
      %p64 = por %p62, %p63
      %p65 = scmp.ne.s32.totalorder %s53, %s54
      %p66 = scmp.eq.s32.totalorder %s23, 1
      %p67 = por %p65, %p66
      %p69 = scmp.ne.s32.totalorder %s54, %s68
      %p70 = scmp.eq.s32.totalorder %s23, 0
      %p71 = por %p69, %p70
      %s73 = sadd.s32 %s72, 1
      %p76 = scmp.eq.s32.totalorder %s17, 1
      %p77 = scmp.ne.s32.totalorder %s72, %s74
      %p78 = scmp.eq.s32.totalorder %s17, 0
      %p79 = por %p77, %p78
      %p80 = scmp.ne.s32.totalorder %s72, %s74
      %p81 = scmp.eq.s32.totalorder %s22, 1
      %p82 = por %p80, %p81
      %p83 = scmp.ne.s32.totalorder %s74, %s75
      %p84 = scmp.eq.s32.totalorder %s22, 0
      %p85 = por %p83, %p84
      %p86 = scmp.ne.s32.totalorder %s74, %s75
      %p87 = scmp.eq.s32.totalorder %s23, 1
      %p88 = por %p86, %p87
      %p90 = scmp.ne.s32.totalorder %s75, %s89
      %p91 = scmp.eq.s32.totalorder %s23, 0
      %p92 = por %p90, %p91
      %s94 = sadd.s32 %s93, 1
      %p97 = scmp.eq.s32.totalorder %s17, 1
      %p98 = scmp.ne.s32.totalorder %s93, %s95
      %p99 = scmp.eq.s32.totalorder %s17, 0
      %p100 = por %p98, %p99
      %p101 = scmp.ne.s32.totalorder %s93, %s95
      %p102 = scmp.eq.s32.totalorder %s22, 1
      %p103 = por %p101, %p102
      %p104 = scmp.ne.s32.totalorder %s95, %s96
      %p105 = scmp.eq.s32.totalorder %s22, 0
      %p106 = por %p104, %p105
      %p107 = scmp.ne.s32.totalorder %s95, %s96
      %p108 = scmp.eq.s32.totalorder %s23, 1
      %p109 = por %p107, %p108
      %p111 = scmp.ne.s32.totalorder %s96, %s110
      %p112 = scmp.eq.s32.totalorder %s23, 0
      %p113 = por %p111, %p112
      %s115 = sadd.s32 %s114, 1
      %p118 = scmp.eq.s32.totalorder %s17, 1
      %p119 = scmp.ne.s32.totalorder %s114, %s116
      %p120 = scmp.eq.s32.totalorder %s17, 0
      %p121 = por %p119, %p120
      %p122 = scmp.ne.s32.totalorder %s114, %s116
      %p123 = scmp.eq.s32.totalorder %s22, 1
      %p124 = por %p122, %p123
      %p125 = scmp.ne.s32.totalorder %s116, %s117
      %p126 = scmp.eq.s32.totalorder %s22, 0
      %p127 = por %p125, %p126
      %p128 = scmp.ne.s32.totalorder %s116, %s117
      %p129 = scmp.eq.s32.totalorder %s23, 1
      %p130 = por %p128, %p129
      %p132 = scmp.ne.s32.totalorder %s117, %s131
      %p133 = scmp.eq.s32.totalorder %s23, 0
      %p134 = por %p132, %p133
      %s136 = sadd.s32 %s135, 1
      %p139 = scmp.eq.s32.totalorder %s17, 1
      %p140 = scmp.ne.s32.totalorder %s135, %s137
      %p141 = scmp.eq.s32.totalorder %s17, 0
      %p142 = por %p140, %p141
      %p143 = scmp.ne.s32.totalorder %s135, %s137
      %p144 = scmp.eq.s32.totalorder %s22, 1
      %p145 = por %p143, %p144
      %p146 = scmp.ne.s32.totalorder %s137, %s138
      %p147 = scmp.eq.s32.totalorder %s22, 0
      %p148 = por %p146, %p147
      %p149 = scmp.ne.s32.totalorder %s137, %s138
      %p150 = scmp.eq.s32.totalorder %s23, 1
      %p151 = por %p149, %p150
      %p153 = scmp.ne.s32.totalorder %s138, %s152
      %p154 = scmp.eq.s32.totalorder %s23, 0
      %p155 = por %p153, %p154
      %s156 = ssub.s32 %s17, %s24
      %p157 = scmp.eq.s32.totalorder %s156, 0
      %s159 = sadd.s32 %s158, 1
      %s160 = scalar_select %p157, %s158, %s159
      %p163 = pneg %p157
      %p164 = scmp.eq.s32.totalorder %s17, 1
      %p165 = por %p163, %p164
      %p166 = scmp.ne.s32.totalorder %s158, %s161
      %p167 = scmp.eq.s32.totalorder %s17, 0
      %p168 = por %p166, %p167
      %p169 = scmp.ne.s32.totalorder %s158, %s161
      %p170 = scmp.eq.s32.totalorder %s22, 1
      %p171 = por %p169, %p170
      %p172 = scmp.ne.s32.totalorder %s161, %s162
      %p173 = scmp.eq.s32.totalorder %s22, 0
      %p174 = por %p172, %p173
      %p175 = scmp.ne.s32.totalorder %s161, %s162
      %p176 = scmp.eq.s32.totalorder %s23, 1
      %p177 = por %p175, %p176
      %p179 = scmp.ne.s32.totalorder %s162, %s178
      %p180 = scmp.eq.s32.totalorder %s23, 0
      %p181 = por %p179, %p180
      %p182 = scmp.le.s32.totalorder 1, %s17
      %p183 = scmp.lt.s32.totalorder %s17, 3
      %p184 = pnand %p182, %p183
      %p185 = pneg %p184
      // Predicated region
      $region9: #{tpu_custom_call.1} parent=5 // pred_check
        _
      $region10: #{tpu_custom_call.1} parent=5 // pred_check_branch
        %187 = sbr.rel (%p184) target = $region12
      $region11: #{tpu_custom_call.1} parent=5 // pred_region
        %s188 = ssub.s32 %s17, 1
        // Predicated region
        $region13: #{tpu_custom_call.1} parent=11 // pred_check
          %p189 = pneg %p64
        $region14: #{tpu_custom_call.1} parent=11 // pred_check_branch
          %191 = sbr.rel (%p189) target = $region16
        $region15: #{tpu_custom_call.1} parent=11 // pred_region
          _
        $region16: #{tpu_custom_call.1} parent=11 // pred_fallthru
          _
        // Predicated region
        $region17: #{tpu_custom_call.1} parent=11 // pred_check
          %p192 = pneg %p85
        $region18: #{tpu_custom_call.1} parent=11 // pred_check_branch
          %194 = sbr.rel (%p192) target = $region20
        $region19: #{tpu_custom_call.1} parent=11 // pred_region
          _
        $region20: #{tpu_custom_call.1} parent=11 // pred_fallthru
          _
        // Predicated region
        $region21: #{tpu_custom_call.1} parent=11 // pred_check
          %p195 = pneg %p106
        $region22: #{tpu_custom_call.1} parent=11 // pred_check_branch
          %197 = sbr.rel (%p195) target = $region24
        $region23: #{tpu_custom_call.1} parent=11 // pred_region
          _
        $region24: #{tpu_custom_call.1} parent=11 // pred_fallthru
          _
        // Predicated region
        $region25: #{tpu_custom_call.1} parent=11 // pred_check
          %p198 = pneg %p127
        $region26: #{tpu_custom_call.1} parent=11 // pred_check_branch
          %200 = sbr.rel (%p198) target = $region28
        $region27: #{tpu_custom_call.1} parent=11 // pred_region
          _
        $region28: #{tpu_custom_call.1} parent=11 // pred_fallthru
          _
        // Predicated region
        $region29: #{tpu_custom_call.1} parent=11 // pred_check
          %p201 = pneg %p148
        $region30: #{tpu_custom_call.1} parent=11 // pred_check_branch
          %203 = sbr.rel (%p201) target = $region32
        $region31: #{tpu_custom_call.1} parent=11 // pred_region
          _
        $region32: #{tpu_custom_call.1} parent=11 // pred_fallthru
          _
      $region12: #{tpu_custom_call.1} parent=5 // pred_fallthru
        _
      %p204 = scmp.lt.s32.totalorder %s17, 2
      // Predicated region
      $region33: #{tpu_custom_call.1} parent=5 // pred_check
        %p205 = pneg %p204
      $region34: #{tpu_custom_call.1} parent=5 // pred_check_branch
        %207 = sbr.rel (%p205) target = $region36
      $region35: #{tpu_custom_call.1} parent=5 // pred_region
        // Predicated region
        $region37: #{tpu_custom_call.1} parent=35 // pred_check
          %p208 = pneg %p37
        $region38: #{tpu_custom_call.1} parent=35 // pred_check_branch
          %210 = sbr.rel (%p208) target = $region40
        $region39: #{tpu_custom_call.1} parent=35 // pred_region
          %s211 = smul.u32 2, %s17
          %p212 = scmp.lt.s32.totalorder %s211, 3
          %s213 = scalar_select %p212, %s211, 3
          %s214 = smul.addr %s213, 2
          %s215 = smul.addr %s214, 8
          %s216 = scalar_lea.vmem %s0, %s215
          %s217 = smul.u32 2, %s17
        $region40: #{tpu_custom_call.1} parent=35 // pred_fallthru
          _
      $region36: #{tpu_custom_call.1} parent=5 // pred_fallthru
        _
      %p218 = scmp.le.s32.totalorder 1, %s17
      %p219 = scmp.lt.s32.totalorder %s17, 3
      %p220 = pnand %p218, %p219
      %p221 = pneg %p220
      // Predicated region
      $region41: #{tpu_custom_call.1} parent=5 // pred_check
        _
      $region42: #{tpu_custom_call.1} parent=5 // pred_check_branch
        %223 = sbr.rel (%p220) target = $region44
      $region43: #{tpu_custom_call.1} parent=5 // pred_region
        %s224 = ssub.s32 %s17, 1
        %s225 = smul.u32 2, %s22
        %p226 = scmp.lt.s32.totalorder %s225, 3
        %s227 = scalar_select %p226, %s225, 3
        %s228 = smul.addr %s227, 2
        %s229 = smul.addr %s228, 8
        %s230 = scalar_lea.vmem %s0, %s229
        %p231 = pneg %p43
        %p232 = pneg %p40
        %p233 = pneg %p64
        %p234 = pneg %p61
        %p235 = pneg %p85
        %p236 = pneg %p82
        %p237 = pneg %p106
        %p238 = pneg %p103
        %p239 = pneg %p127
        %p240 = pneg %p124
        %p241 = pneg %p148
        %p242 = pneg %p145
        %p243 = pneg %p174
        %p244 = pneg %p171
        %s245 = sand.u32 %s161, 1
        %s246 = scalar_lea.sflag [#allocation5], %s245
        %s247 = sand.u32 %s161, 1
        %s248 = smul.addr %s247, 64
        %s249 = scalar_lea.vmem [#allocation4], %s248
        %s250 = smul.u32 2, %s22
        %p251 = scmp.lt.s32.totalorder %s250, 3
        %s252 = scalar_select %p251, %s250, 3
        %s253 = smul.addr %s252, 2
        %s254 = smul.addr %s253, 8
        %s255 = scalar_lea.vmem %s0, %s254
        %s256 = smul.u32 2, %s22
        %s257 = smul.u32 2, %s22
        %v259 = vlaneseq
        %v260 = vand.u32 %v259, 127
        %v261 = vld [vmem:[%s255] sm:$0xff]
        %v262 = vld [vmem:[%s255 + $0x8] sm:$0xff]
        %263 = vrot.lane.b32.xlu0 %v261, 2
        %v264 = vpop.permute.xlu0 %263
        %265 = vrot.lane.b32.xlu0 %v262, 2
        %v266 = vpop.permute.xlu0 %265
        %vm267 = vcmp.ge.s32.totalorder %v260, 2
        %v268 = vsel %vm267, %v264, 0.0
        %v269 = vsel %vm267, %v266, 0.0
        %270 = vrot.lane.b32.xlu0 %v261, 1
        %v271 = vpop.permute.xlu0 %270
        %272 = vrot.lane.b32.xlu0 %v262, 1
        %v273 = vpop.permute.xlu0 %272
        %vm274 = vcmp.ge.s32.totalorder %v260, 1
        %v275 = vsel %vm274, %v271, 0.0
        %v276 = vsel %vm274, %v273, 0.0
        %277 = vrot.lane.b32.xlu0 %v261, 127
        %v278 = vpop.permute.xlu0 %277
        %279 = vrot.lane.b32.xlu0 %v262, 127
        %v280 = vpop.permute.xlu0 %279
        %vm281 = vcmp.lt.s32.totalorder %v260, 127
        %v282 = vsel %vm281, %v278, 0.0
        %v283 = vsel %vm281, %v280, 0.0
        %284 = vrot.lane.b32.xlu0 %v261, 126
        %v285 = vpop.permute.xlu0 %284
        %286 = vrot.lane.b32.xlu0 %v262, 126
        %v287 = vpop.permute.xlu0 %286
        %vm288 = vcmp.lt.s32.totalorder %v260, 126
        %v289 = vsel %vm288, %v285, 0.0
        %v290 = vsel %vm288, %v287, 0.0
        %v291 = vpack.c.bf16 %v269, %v268
        %v292 = vpack.c.bf16 %v276, %v275
        %v293 = vpack.c.bf16 %v262, %v261
        %v294 = vpack.c.bf16 %v283, %v282
        %v295 = vpack.c.bf16 %v290, %v289
        %v296 = vld [vmem:[%s1] sm:$0xf]
        %v297 = vld [vmem:[%s1 + $0x4] sm:$0xf]
        %v298 = vld [vmem:[%s1 + $0x8] sm:$0xf]
        %v299 = vld [vmem:[%s1 + $0xc] sm:$0xf]
        %v300 = vld [vmem:[%s2] sm:$0xff]
        %v301 = vld [vmem:[%s2 + $0x8] sm:$0xff]
        %v302 = vld [vmem:[%s2 + $0x10] sm:$0xff]
        %v303 = vld [vmem:[%s2 + $0x18] sm:$0xff]
        %305 = vset.pattern.permute.xlu0 0
        %306 = vperm.xlu0 %305, %v300
        %v307 = vpop.permute.xlu0 %306
        %310 = vset.pattern.permute.xlu0 0
        %311 = vperm.xlu0 %310, %v301
        %v312 = vpop.permute.xlu0 %311
        %315 = vset.pattern.permute.xlu0 0
        %316 = vperm.xlu0 %315, %v302
        %v317 = vpop.permute.xlu0 %316
        %320 = vset.pattern.permute.xlu0 0
        %321 = vperm.xlu0 %320, %v303
        %v322 = vpop.permute.xlu0 %321
        %v328 = vunpack.c.l.b16 %v296
        %v329 = vunpack.c.l.b16 %v297
        %v330 = vunpack.c.l.b16 %v298
        %v331 = vunpack.c.l.b16 %v299
        %v332 = vpack.c.b16 %v329, %v328
        %v333 = vpack.c.b16 %v331, %v330
        %vm334 = vcmask 654336
        %v336 = vsel %vm334, %v332, 0
        %v339 = vsel %vm334, %v333, 0
        %341 = vmatprep.subr.bf16.mxu0 0
        %342 = vmatpush1.bf16.msra.mxu0 %v291
        %343 = vmatprep.subr.bf16.mxu0 0
        %344 = vmatpush1.bf16.msra.mxu0 %v292
        %345 = vmatprep.subr.bf16.mxu0 0
        %346 = vmatpush1.bf16.msra.mxu0 %v293
        %347 = vmatprep.subr.bf16.mxu0 0
        %348 = vmatpush1.bf16.msra.mxu0 %v294
        %349 = vmatprep.subr.bf16.mxu0 0
        %350 = vmatpush1.bf16.msra.mxu0 %v295
        %351 = vmatprep.subr.bf16.mxu0 0
        %352 = vmatpush1.bf16.msra.mxu0 0
        %353 = vmatprep.subr.bf16.mxu0 0
        %354 = vmatpush1.bf16.msra.mxu0 0
        %355 = vmatprep.subr.bf16.mxu0 0
        %356 = vmatpush1.bf16.msra.mxu0 0
        %357 = vmatprep.subr.bf16.mxu0 0
        %358 = vmatpush1.bf16.msra.mxu0 0
        %359 = vmatprep.subr.bf16.mxu0 0
        %360 = vmatpush1.bf16.msra.mxu0 0
        %361 = vmatprep.subr.bf16.mxu0 0
        %362 = vmatpush1.bf16.msra.mxu0 0
        %363 = vmatprep.subr.bf16.mxu0 0
        %364 = vmatpush1.bf16.msra.mxu0 0
        %365 = vmatprep.subr.bf16.mxu0 0
        %366 = vmatpush1.bf16.msra.mxu0 0
        %367 = vmatprep.subr.bf16.mxu0 0
        %368 = vmatpush1.bf16.msra.mxu0 0
        %369 = vmatprep.subr.bf16.mxu0 0
        %370 = vmatpush1.bf16.msra.mxu0 0
        %371 = vmatprep.subr.bf16.mxu0 0
        %372 = vmatpush1.bf16.msra.mxu0 0
        %373 = vmatprep.mubr.bf16.mxu0 0
        %374 = vmatmul.mubr.bf16.gmra.mrb[0].mxu0 %v336
        %v375 = vpop.f32.mrb[0].mxu0
        %v376 = vadd.f32 %v307, %v375
        %v377 = vpop.f32.mrb[0].mxu0
        %v378 = vpop.f32.mrb[0].mxu0
        %v379 = vadd.f32 %v312, %v378
        %v380 = vpop.f32.mrb[0].mxu0
        %381 = vmatprep.mubr.bf16.mxu0 0
        %382 = vmatmul.mubr.bf16.gmra.mrb[0].mxu0 %v339
        %v383 = vpop.f32.mrb[0].mxu0
        %v384 = vadd.f32 %v317, %v383
        %v385 = vpop.f32.mrb[0].mxu0
        %v386 = vpop.f32.mrb[0].mxu0
        %v387 = vadd.f32 %v322, %v386
        %v388 = vpop.f32.mrb[0].mxu0
        %389 = vdwg.mxu0
        %390 = vst [vmem:[#allocation2] sm:$0xff] %v376
        %391 = vst [vmem:[#allocation2 + $0x8] sm:$0xff] %v379
        %392 = vst [vmem:[#allocation2 + $0x10] sm:$0xff] %v384
        %393 = vst [vmem:[#allocation2 + $0x18] sm:$0xff] %v387
        %v394 = vld [vmem:[#allocation2] sm:$0xff]
        %v395 = vld [vmem:[#allocation2 + $0x8] sm:$0xff]
        %v396 = vld [vmem:[#allocation2 + $0x10] sm:$0xff]
        %v397 = vld [vmem:[#allocation2 + $0x18] sm:$0xff]
        %v398 = vadd.f32 %v394, %v395
        %v399 = vadd.f32 %v398, %v396
        %v400 = vadd.f32 %v399, %v397
        %401 = vadd.xlane.f32.xlu0 %v400
        %v402 = vpop.xlane.xlu0 %401
        %v403 = vrot.slane %v402, 4
        %v404 = vadd.f32 %v402, %v403
        %v405 = vrot.slane %v404, 2
        %v406 = vadd.f32 %v404, %v405
        %v407 = vrot.slane %v406, 1
        %v408 = vadd.f32 %v406, %v407
        %s409 = vtos %v408
        %v410 = vstv %s409
        %v411 = vmul.f32 %v394, %v394
        %v412 = vmul.f32 %v395, %v395
        %v413 = vmul.f32 %v396, %v396
        %v414 = vmul.f32 %v397, %v397
        %v415 = vadd.f32 %v411, %v412
        %v416 = vadd.f32 %v415, %v413
        %v417 = vadd.f32 %v416, %v414
        %418 = vadd.xlane.f32.xlu0 %v417
        %v419 = vpop.xlane.xlu0 %418
        %v420 = vrot.slane %v419, 4
        %v421 = vadd.f32 %v419, %v420
        %v422 = vrot.slane %v421, 2
        %v423 = vadd.f32 %v421, %v422
        %v424 = vrot.slane %v423, 1
        %v425 = vadd.f32 %v423, %v424
        %s426 = vtos %v425
        %v427 = vstv %s426
        %v428 = vmul.f32 %v410, 0.00024414063
        %v429 = vmul.f32 %v427, 0.00024414063
        %v430 = vmul.f32 %v428, %v428
        %v431 = vsub.f32 %v429, %v430
        %v432 = vmax.f32 %v431, 0.0
        %v433 = vld [vmem:[%s3] sm:$0xff]
        %v434 = vld [vmem:[%s3 + $0x8] sm:$0xff]
        %v435 = vld [vmem:[%s3 + $0x10] sm:$0xff]
        %v436 = vld [vmem:[%s3 + $0x18] sm:$0xff]
        %v437 = vadd.f32 %v432, 1e-08
        %v438 = vrsqrt.pop %v437
        %v439 = vmul.f32 %v433, %v438
        %v440 = vmul.f32 %v434, %v438
        %v441 = vmul.f32 %v435, %v438
        %v442 = vmul.f32 %v436, %v438
        %v443 = vld [vmem:[%s4] sm:$0xff]
        %v444 = vld [vmem:[%s4 + $0x8] sm:$0xff]
        %v445 = vld [vmem:[%s4 + $0x10] sm:$0xff]
        %v446 = vld [vmem:[%s4 + $0x18] sm:$0xff]
        %v447 = vmul.f32 %v428, %v439
        %v448 = vmul.f32 %v428, %v440
        %v449 = vmul.f32 %v428, %v441
        %v450 = vmul.f32 %v428, %v442
        %v451 = vsub.f32 %v443, %v447
        %v452 = vsub.f32 %v444, %v448
        %v453 = vsub.f32 %v445, %v449
        %v454 = vsub.f32 %v446, %v450
        %456 = vset.pattern.permute.xlu0 0
        %457 = vperm.xlu0 %456, %v439
        %v458 = vpop.permute.xlu0 %457
        %461 = vset.pattern.permute.xlu0 0
        %462 = vperm.xlu0 %461, %v440
        %v463 = vpop.permute.xlu0 %462
        %466 = vset.pattern.permute.xlu0 0
        %467 = vperm.xlu0 %466, %v441
        %v468 = vpop.permute.xlu0 %467
        %471 = vset.pattern.permute.xlu0 0
        %472 = vperm.xlu0 %471, %v442
        %v473 = vpop.permute.xlu0 %472
        %v475 = vmul.f32 %v394, %v458
        %v476 = vmul.f32 %v395, %v463
        %v477 = vmul.f32 %v396, %v468
        %v478 = vmul.f32 %v397, %v473
        %480 = vset.pattern.permute.xlu0 0
        %481 = vperm.xlu0 %480, %v451
        %v482 = vpop.permute.xlu0 %481
        %485 = vset.pattern.permute.xlu0 0
        %486 = vperm.xlu0 %485, %v452
        %v487 = vpop.permute.xlu0 %486
        %490 = vset.pattern.permute.xlu0 0
        %491 = vperm.xlu0 %490, %v453
        %v492 = vpop.permute.xlu0 %491
        %495 = vset.pattern.permute.xlu0 0
        %496 = vperm.xlu0 %495, %v454
        %v497 = vpop.permute.xlu0 %496
        %v499 = vadd.f32 %v475, %v482
        %v500 = vadd.f32 %v476, %v487
        %v501 = vadd.f32 %v477, %v492
        %v502 = vadd.f32 %v478, %v497
        %vm503 = vcmp.ge.f32.partialorder %v499, 0.0
        %vm504 = vcmp.ge.f32.partialorder %v500, 0.0
        %vm505 = vcmp.ge.f32.partialorder %v501, 0.0
        %vm506 = vcmp.ge.f32.partialorder %v502, 0.0
        %v507 = vld [vmem:[#allocation3] sm:$0x1]
        %v509 = vlaneseq
        %v510 = vshrl.u32 %v509, 7
        %v511 = vsub.s32 0, %v510
        %v512 = vrot.slane %v507, %v511
        %513 = vset.pattern.permute.xlu0 0
        %514 = vperm.xlu0 %513, %v512
        %v515 = vpop.permute.xlu0 %514
        %v517 = vmul.f32 %v515, %v499
        %v518 = vmul.f32 %v515, %v500
        %v519 = vmul.f32 %v515, %v501
        %v520 = vmul.f32 %v515, %v502
        %v521 = vsel %vm503, %v499, %v517
        %v522 = vsel %vm504, %v500, %v518
        %v523 = vsel %vm505, %v501, %v519
        %v524 = vsel %vm506, %v502, %v520
        %525 = vst [vmem:[%s249] sm:$0xff] %v521
        %526 = vst [vmem:[%s249 + $0x8] sm:$0xff] %v522
        %527 = vst [vmem:[%s249 + $0x10] sm:$0xff] %v523
        %528 = vst [vmem:[%s249 + $0x18] sm:$0xff] %v524
        %s529 = scalar_lea.vmem %s255, 16
        %v530 = vld [vmem:[%s529] sm:$0xff]
        %v531 = vld [vmem:[%s529 + $0x8] sm:$0xff]
        %532 = vrot.lane.b32.xlu0 %v530, 2
        %v533 = vpop.permute.xlu0 %532
        %534 = vrot.lane.b32.xlu0 %v531, 2
        %v535 = vpop.permute.xlu0 %534
        %v536 = vsel %vm267, %v533, 0.0
        %v537 = vsel %vm267, %v535, 0.0
        %538 = vrot.lane.b32.xlu0 %v530, 1
        %v539 = vpop.permute.xlu0 %538
        %540 = vrot.lane.b32.xlu0 %v531, 1
        %v541 = vpop.permute.xlu0 %540
        %v542 = vsel %vm274, %v539, 0.0
        %v543 = vsel %vm274, %v541, 0.0
        %544 = vrot.lane.b32.xlu0 %v530, 127
        %v545 = vpop.permute.xlu0 %544
        %546 = vrot.lane.b32.xlu0 %v531, 127
        %v547 = vpop.permute.xlu0 %546
        %v548 = vsel %vm281, %v545, 0.0
        %v549 = vsel %vm281, %v547, 0.0
        %550 = vrot.lane.b32.xlu0 %v530, 126
        %v551 = vpop.permute.xlu0 %550
        %552 = vrot.lane.b32.xlu0 %v531, 126
        %v553 = vpop.permute.xlu0 %552
        %v554 = vsel %vm288, %v551, 0.0
        %v555 = vsel %vm288, %v553, 0.0
        %v556 = vpack.c.bf16 %v537, %v536
        %v557 = vpack.c.bf16 %v543, %v542
        %v558 = vpack.c.bf16 %v531, %v530
        %v559 = vpack.c.bf16 %v549, %v548
        %v560 = vpack.c.bf16 %v555, %v554
        %v561 = vld [vmem:[%s1] sm:$0xf]
        %v562 = vld [vmem:[%s1 + $0x4] sm:$0xf]
        %v563 = vld [vmem:[%s1 + $0x8] sm:$0xf]
        %v564 = vld [vmem:[%s1 + $0xc] sm:$0xf]
        %v565 = vld [vmem:[%s2] sm:$0xff]
        %v566 = vld [vmem:[%s2 + $0x8] sm:$0xff]
        %v567 = vld [vmem:[%s2 + $0x10] sm:$0xff]
        %v568 = vld [vmem:[%s2 + $0x18] sm:$0xff]
        %570 = vset.pattern.permute.xlu0 0
        %571 = vperm.xlu0 %570, %v565
        %v572 = vpop.permute.xlu0 %571
        %575 = vset.pattern.permute.xlu0 0
        %576 = vperm.xlu0 %575, %v566
        %v577 = vpop.permute.xlu0 %576
        %580 = vset.pattern.permute.xlu0 0
        %581 = vperm.xlu0 %580, %v567
        %v582 = vpop.permute.xlu0 %581
        %585 = vset.pattern.permute.xlu0 0
        %586 = vperm.xlu0 %585, %v568
        %v587 = vpop.permute.xlu0 %586
        %v593 = vunpack.c.l.b16 %v561
        %v594 = vunpack.c.l.b16 %v562
        %v595 = vunpack.c.l.b16 %v563
        %v596 = vunpack.c.l.b16 %v564
        %v597 = vpack.c.b16 %v594, %v593
        %v598 = vpack.c.b16 %v596, %v595
        %v600 = vsel %vm334, %v597, 0
        %v603 = vsel %vm334, %v598, 0
        %605 = vmatprep.subr.bf16.mxu0 0
        %606 = vmatpush1.bf16.msra.mxu0 %v556
        %607 = vmatprep.subr.bf16.mxu0 0
        %608 = vmatpush1.bf16.msra.mxu0 %v557
        %609 = vmatprep.subr.bf16.mxu0 0
        %610 = vmatpush1.bf16.msra.mxu0 %v558
        %611 = vmatprep.subr.bf16.mxu0 0
        %612 = vmatpush1.bf16.msra.mxu0 %v559
        %613 = vmatprep.subr.bf16.mxu0 0
        %614 = vmatpush1.bf16.msra.mxu0 %v560
        %615 = vmatprep.subr.bf16.mxu0 0
        %616 = vmatpush1.bf16.msra.mxu0 0
        %617 = vmatprep.subr.bf16.mxu0 0
        %618 = vmatpush1.bf16.msra.mxu0 0
        %619 = vmatprep.subr.bf16.mxu0 0
        %620 = vmatpush1.bf16.msra.mxu0 0
        %621 = vmatprep.subr.bf16.mxu0 0
        %622 = vmatpush1.bf16.msra.mxu0 0
        %623 = vmatprep.subr.bf16.mxu0 0
        %624 = vmatpush1.bf16.msra.mxu0 0
        %625 = vmatprep.subr.bf16.mxu0 0
        %626 = vmatpush1.bf16.msra.mxu0 0
        %627 = vmatprep.subr.bf16.mxu0 0
        %628 = vmatpush1.bf16.msra.mxu0 0
        %629 = vmatprep.subr.bf16.mxu0 0
        %630 = vmatpush1.bf16.msra.mxu0 0
        %631 = vmatprep.subr.bf16.mxu0 0
        %632 = vmatpush1.bf16.msra.mxu0 0
        %633 = vmatprep.subr.bf16.mxu0 0
        %634 = vmatpush1.bf16.msra.mxu0 0
        %635 = vmatprep.subr.bf16.mxu0 0
        %636 = vmatpush1.bf16.msra.mxu0 0
        %637 = vmatprep.mubr.bf16.mxu0 0
        %638 = vmatmul.mubr.bf16.gmra.mrb[0].mxu0 %v600
        %v639 = vpop.f32.mrb[0].mxu0
        %v640 = vadd.f32 %v572, %v639
        %v641 = vpop.f32.mrb[0].mxu0
        %v642 = vpop.f32.mrb[0].mxu0
        %v643 = vadd.f32 %v577, %v642
        %v644 = vpop.f32.mrb[0].mxu0
        %645 = vmatprep.mubr.bf16.mxu0 0
        %646 = vmatmul.mubr.bf16.gmra.mrb[0].mxu0 %v603
        %v647 = vpop.f32.mrb[0].mxu0
        %v648 = vadd.f32 %v582, %v647
        %v649 = vpop.f32.mrb[0].mxu0
        %v650 = vpop.f32.mrb[0].mxu0
        %v651 = vadd.f32 %v587, %v650
        %v652 = vpop.f32.mrb[0].mxu0
        %653 = vdwg.mxu0
        %654 = vst [vmem:[#allocation2] sm:$0xff] %v640
        %655 = vst [vmem:[#allocation2 + $0x8] sm:$0xff] %v643
        %656 = vst [vmem:[#allocation2 + $0x10] sm:$0xff] %v648
        %657 = vst [vmem:[#allocation2 + $0x18] sm:$0xff] %v651
        %v658 = vld [vmem:[#allocation2] sm:$0xff]
        %v659 = vld [vmem:[#allocation2 + $0x8] sm:$0xff]
        %v660 = vld [vmem:[#allocation2 + $0x10] sm:$0xff]
        %v661 = vld [vmem:[#allocation2 + $0x18] sm:$0xff]
        %v662 = vadd.f32 %v658, %v659
        %v663 = vadd.f32 %v662, %v660
        %v664 = vadd.f32 %v663, %v661
        %665 = vadd.xlane.f32.xlu0 %v664
        %v666 = vpop.xlane.xlu0 %665
        %v667 = vrot.slane %v666, 4
        %v668 = vadd.f32 %v666, %v667
        %v669 = vrot.slane %v668, 2
        %v670 = vadd.f32 %v668, %v669
        %v671 = vrot.slane %v670, 1
        %v672 = vadd.f32 %v670, %v671
        %s673 = vtos %v672
        %v674 = vstv %s673
        %v675 = vmul.f32 %v658, %v658
        %v676 = vmul.f32 %v659, %v659
        %v677 = vmul.f32 %v660, %v660
        %v678 = vmul.f32 %v661, %v661
        %v679 = vadd.f32 %v675, %v676
        %v680 = vadd.f32 %v679, %v677
        %v681 = vadd.f32 %v680, %v678
        %682 = vadd.xlane.f32.xlu0 %v681
        %v683 = vpop.xlane.xlu0 %682
        %v684 = vrot.slane %v683, 4
        %v685 = vadd.f32 %v683, %v684
        %v686 = vrot.slane %v685, 2
        %v687 = vadd.f32 %v685, %v686
        %v688 = vrot.slane %v687, 1
        %v689 = vadd.f32 %v687, %v688
        %s690 = vtos %v689
        %v691 = vstv %s690
        %v692 = vmul.f32 %v674, 0.00024414063
        %v693 = vmul.f32 %v691, 0.00024414063
        %v694 = vmul.f32 %v692, %v692
        %v695 = vsub.f32 %v693, %v694
        %v696 = vmax.f32 %v695, 0.0
        %v697 = vld [vmem:[%s3] sm:$0xff]
        %v698 = vld [vmem:[%s3 + $0x8] sm:$0xff]
        %v699 = vld [vmem:[%s3 + $0x10] sm:$0xff]
        %v700 = vld [vmem:[%s3 + $0x18] sm:$0xff]
        %v701 = vadd.f32 %v696, 1e-08
        %v702 = vrsqrt.pop %v701
        %v703 = vmul.f32 %v697, %v702
        %v704 = vmul.f32 %v698, %v702
        %v705 = vmul.f32 %v699, %v702
        %v706 = vmul.f32 %v700, %v702
        %v707 = vld [vmem:[%s4] sm:$0xff]
        %v708 = vld [vmem:[%s4 + $0x8] sm:$0xff]
        %v709 = vld [vmem:[%s4 + $0x10] sm:$0xff]
        %v710 = vld [vmem:[%s4 + $0x18] sm:$0xff]
        %v711 = vmul.f32 %v692, %v703
        %v712 = vmul.f32 %v692, %v704
        %v713 = vmul.f32 %v692, %v705
        %v714 = vmul.f32 %v692, %v706
        %v715 = vsub.f32 %v707, %v711
        %v716 = vsub.f32 %v708, %v712
        %v717 = vsub.f32 %v709, %v713
        %v718 = vsub.f32 %v710, %v714
        %720 = vset.pattern.permute.xlu0 0
        %721 = vperm.xlu0 %720, %v703
        %v722 = vpop.permute.xlu0 %721
        %725 = vset.pattern.permute.xlu0 0
        %726 = vperm.xlu0 %725, %v704
        %v727 = vpop.permute.xlu0 %726
        %730 = vset.pattern.permute.xlu0 0
        %731 = vperm.xlu0 %730, %v705
        %v732 = vpop.permute.xlu0 %731
        %735 = vset.pattern.permute.xlu0 0
        %736 = vperm.xlu0 %735, %v706
        %v737 = vpop.permute.xlu0 %736
        %v739 = vmul.f32 %v658, %v722
        %v740 = vmul.f32 %v659, %v727
        %v741 = vmul.f32 %v660, %v732
        %v742 = vmul.f32 %v661, %v737
        %744 = vset.pattern.permute.xlu0 0
        %745 = vperm.xlu0 %744, %v715
        %v746 = vpop.permute.xlu0 %745
        %749 = vset.pattern.permute.xlu0 0
        %750 = vperm.xlu0 %749, %v716
        %v751 = vpop.permute.xlu0 %750
        %754 = vset.pattern.permute.xlu0 0
        %755 = vperm.xlu0 %754, %v717
        %v756 = vpop.permute.xlu0 %755
        %759 = vset.pattern.permute.xlu0 0
        %760 = vperm.xlu0 %759, %v718
        %v761 = vpop.permute.xlu0 %760
        %v763 = vadd.f32 %v739, %v746
        %v764 = vadd.f32 %v740, %v751
        %v765 = vadd.f32 %v741, %v756
        %v766 = vadd.f32 %v742, %v761
        %vm767 = vcmp.ge.f32.partialorder %v763, 0.0
        %vm768 = vcmp.ge.f32.partialorder %v764, 0.0
        %vm769 = vcmp.ge.f32.partialorder %v765, 0.0
        %vm770 = vcmp.ge.f32.partialorder %v766, 0.0
        %v771 = vld [vmem:[#allocation3] sm:$0x1]
        %v773 = vlaneseq
        %v774 = vshrl.u32 %v773, 7
        %v775 = vsub.s32 0, %v774
        %v776 = vrot.slane %v771, %v775
        %777 = vset.pattern.permute.xlu0 0
        %778 = vperm.xlu0 %777, %v776
        %v779 = vpop.permute.xlu0 %778
        %v781 = vmul.f32 %v779, %v763
        %v782 = vmul.f32 %v779, %v764
        %v783 = vmul.f32 %v779, %v765
        %v784 = vmul.f32 %v779, %v766
        %v785 = vsel %vm767, %v763, %v781
        %v786 = vsel %vm768, %v764, %v782
        %v787 = vsel %vm769, %v765, %v783
        %v788 = vsel %vm770, %v766, %v784
        %s789 = scalar_lea.vmem %s249, 32 [#allocation4]
        %790 = vst [vmem:[%s789] sm:$0xff] %v785
        %791 = vst [vmem:[%s789 + $0x8] sm:$0xff] %v786
        %792 = vst [vmem:[%s789 + $0x10] sm:$0xff] %v787
        %793 = vst [vmem:[%s789 + $0x18] sm:$0xff] %v788
        %s794 = sand.u32 %s161, 1
        %s795 = scalar_lea.sflag [#allocation5], %s794
        %s796 = sand.u32 %s161, 1
        %s797 = smul.addr %s796, 64
        %s798 = scalar_lea.vmem [#allocation4], %s797
        // Predicated region
        $region45: #{tpu_custom_call.1} parent=43 // pred_check
          %p799 = pneg %p171
        $region46: #{tpu_custom_call.1} parent=43 // pred_check_branch
          %801 = sbr.rel (%p799) target = $region48
        $region47: #{tpu_custom_call.1} parent=43 // pred_region
          %s802 = smul.u32 2, %s22
          %s804 = ssub.s32 1024, 1024
          %805 = vsyncadd %s795, %s804
          %s806 = smul.addr %s802, 4
          %s807 = smul.addr %s806, 128
          %s808 = scalar_lea.hbm %s6, %s807
          %s809 = sshll.u32 %s798, 4
          %s810 = int_to_ptr.vmem [resolvable:$true] %s809
          %815 = dma.vmem_to_hbm [thread:$0]  %s810, 1024, %s808, %s795, 128, 128, 8
        $region48: #{tpu_custom_call.1} parent=43 // pred_fallthru
          _
      $region44: #{tpu_custom_call.1} parent=5 // pred_fallthru
        _
      %p816 = scmp.le.s32.totalorder 2, %s17
      // Predicated region
      $region49: #{tpu_custom_call.1} parent=5 // pred_check
        %p817 = pneg %p816
      $region50: #{tpu_custom_call.1} parent=5 // pred_check_branch
        %819 = sbr.rel (%p817) target = $region52
      $region51: #{tpu_custom_call.1} parent=5 // pred_region
        %s820 = ssub.s32 %s17, 2
        // Predicated region
        $region53: #{tpu_custom_call.1} parent=51 // pred_check
          %p821 = pneg %p177
        $region54: #{tpu_custom_call.1} parent=51 // pred_check_branch
          %823 = sbr.rel (%p821) target = $region56
        $region55: #{tpu_custom_call.1} parent=51 // pred_region
          %s824 = sand.u32 %s162, 1
          %s825 = scalar_lea.sflag [#allocation5], %s824
          %s826 = sand.u32 %s162, 1
          %s827 = smul.addr %s826, 64
          %s828 = scalar_lea.vmem [#allocation4], %s827
          %829 = dma.done %s825, 1024
        $region56: #{tpu_custom_call.1} parent=51 // pred_fallthru
          _
      $region52: #{tpu_custom_call.1} parent=5 // pred_fallthru
        _
    $region6: #{tpu_custom_call.1} parent=1 // loop_footer
      %s21 = sadd.s32 1, %s17
    $region7: #{tpu_custom_call.1} parent=1 // loop_footer_branch
      %16 = sbr.rel target = $region3
    $region8: #{tpu_custom_call.1} parent=1 // loop_exit
      _
    %830 = vsyncpa [#allocation5], 1
    %s831 = scalar_lea.sflag [#allocation5], 1
    %832 = vsyncpa %s831, 1

</llo_original>
